<compile_context>
chip_gen: v7x
topology: tpu7x:2x2x1
jax: 0.10.0
libtpu: 0.0.40
codegen_flags: <defaults>
</compile_context>

<pallas_src>
import jax
import jax.numpy as jnp
from jax.experimental import pallas as pl
from jax.experimental.pallas import tpu as pltpu

_INV_SQRT2 = 0.7071067811865476
_BN_EPS = 1e-3
_VMEM_LIMIT = 32 * 1024 * 1024


def conv_stats_kernel(lhs_ref, w_ref, y_ref, sum_ref, ssq_ref):
    # lhs_ref : (TR, G*9*Cin)    im2col patches, G pixels packed per row (lane-dense)
    # w_ref   : (G*9*Cin, G*Cout) block-diagonal conv weights
    # y_ref   : (TR, G*Cout)     conv output tile (lane-dense, compute dtype)
    # sum_ref : (1, 1, G*Cout)   per-tile per-(g, channel) sum(y)
    # ssq_ref : (1, 1, G*Cout)   per-tile per-(g, channel) sum(y*y)
    y = jnp.dot(lhs_ref[...], w_ref[...], preferred_element_type=jnp.float32)
    y_ref[...] = y.astype(y_ref.dtype)
    # Partial BN statistics from the f32 MXU result (before any bf16 cast);
    # cross-sublane reductions go to the XLU.
    sum_ref[0] = jnp.sum(y, axis=0, keepdims=True)
    ssq_ref[0] = jnp.sum(y * y, axis=0, keepdims=True)


def bn_gelu_kernel(y_ref, scale_ref, shift_ref, o_ref):
    # y_ref : (TR, G*Cout); scale/shift : (1, G*Cout).
    # All math in f32 (load-cast only) -- v5e has no bf16 VPU/EUP datapath.
    y = y_ref[...].astype(jnp.float32)
    y = y * scale_ref[...] + shift_ref[...]
    # Exact (erf) GELU, matching nn.GELU(approximate='none').
    o_ref[...] = (0.5 * y * (1.0 + jax.lax.erf(y * _INV_SQRT2))).astype(o_ref.dtype)


def _default_tile_rows():
    # ~512 rows saturates HBM on 128-MiB-VMEM parts (v5e/v6e); halve on v7x
    # (64 MiB physical VMEM) to keep double-buffering alive with headroom.
    try:
        vmem = getattr(pltpu.get_tpu_info(), "vmem_capacity_bytes", None)
    except Exception:  # interpret mode / API drift -> be conservative.
        vmem = None
    if vmem is None:
        return 256
    return 512 if vmem >= (96 << 20) else 256


def conv_bn_relu_forward(x_nchw, w_oihw, bias, gamma, beta, *,
                         tile_rows=None, compute_dtype=jnp.bfloat16):
    """NCHW in / NCHW out, matching the PyTorch module's forward.

    `bias` is accepted for API parity but intentionally unused: training-mode
    BatchNorm subtracts the per-channel batch mean, so a per-channel constant
    added by the conv bias cancels exactly in (y - mean(y)).
    # TODO(synk): if this block is ever run in eval mode (running statistics),
    # the conv bias must be re-introduced and running_mean/var used instead.
    """
    del bias
    N, Cin, H, W = x_nchw.shape
    Cout = w_oihw.shape[0]
    M = N * H * W

    # Pixel-group size so that G*Cout == 128 lanes (lane-dense compute/stores).
    if Cout <= 128 and 128 % Cout == 0 and M % (128 // Cout) == 0:
        G = 128 // Cout
    else:
        G = 1
    GC = G * Cout
    GK = G * 9 * Cin
    R = M // G  # rows of the packed activation

    # ---- wrapper-side layout prep (plain XLA ops in HBM) ---------------------
    x_nhwc = jnp.transpose(x_nchw, (0, 2, 3, 1))
    x_pad = jnp.pad(x_nhwc, ((0, 0), (1, 1), (1, 1), (0, 0)))
    # TODO(synk): fold im2col into kernel 1 (halo'd H-row band DMA + in-VMEM tap
    # slicing) to cut activation HBM reads ~9x; bf16 patches below is the
    # review-sanctioned stop-gap while im2col stays wrapper-side.
    taps = [x_pad[:, kh:kh + H, kw:kw + W, :] for kh in range(3) for kw in range(3)]
    patches = jnp.concatenate(taps, axis=-1).reshape(R, GK).astype(compute_dtype)

    # (Cout, Cin, 3, 3) -> (9*Cin, Cout), then block-diagonal expansion so the
    # MXU output lands directly in the lane-dense (rows, G*Cout) layout.
    w_mat = jnp.transpose(w_oihw, (2, 3, 1, 0)).reshape(9 * Cin, Cout)
    w_blk = jnp.kron(jnp.eye(G, dtype=w_mat.dtype), w_mat).astype(compute_dtype)

    # ---- tiling: fixed VMEM-safe tile + zero-row padding ----------------------
    if tile_rows is None:
        tile_rows = _default_tile_rows()
    tile_rows = max(16, -(-int(tile_rows) // 16) * 16)   # sublane-aligned (bf16-safe)
    tile_rows = min(tile_rows, -(-R // 16) * 16)          # don't overshoot tiny inputs
    n_tiles = pl.cdiv(R, tile_rows)
    R_pad = n_tiles * tile_rows
    if R_pad != R:
        # Zero rows contribute 0 to sum/ssq; mean/var still divide by true M.
        patches = jnp.pad(patches, ((0, R_pad - R), (0, 0)))

    cparams = pltpu.CompilerParams(
        dimension_semantics=("parallel",),   # shards across both TCs on v7x megacore
        vmem_limit_bytes=_VMEM_LIMIT)

    # ---- kernel 1: conv matmul + per-tile partial BN statistics --------------
    y_conv, psum, pssq = pl.pallas_call(
        conv_stats_kernel,
        grid=(n_tiles,),
        in_specs=[pl.BlockSpec((tile_rows, GK), lambda i: (i, 0)),
                  pl.BlockSpec((GK, GC), lambda i: (0, 0))],
        out_specs=[pl.BlockSpec((tile_rows, GC), lambda i: (i, 0)),
                   pl.BlockSpec((1, 1, GC), lambda i: (i, 0, 0)),
                   pl.BlockSpec((1, 1, GC), lambda i: (i, 0, 0))],
        out_shape=(jax.ShapeDtypeStruct((R_pad, GC), compute_dtype),
                   jax.ShapeDtypeStruct((n_tiles, 1, GC), jnp.float32),
                   jax.ShapeDtypeStruct((n_tiles, 1, GC), jnp.float32)),
        compiler_params=cparams,
    )(patches, w_blk)

    # ---- fold BN into a per-channel scale/shift (tiny reduction in XLA) ------
    ch_sum = psum.sum(axis=(0, 1)).reshape(G, Cout).sum(axis=0)
    ch_ssq = pssq.sum(axis=(0, 1)).reshape(G, Cout).sum(axis=0)
    mean = ch_sum / M
    var = ch_ssq / M - mean * mean       # biased variance (BN training mode)
    # TODO(synk): for very large M use shifted/compensated per-tile sums to
    # avoid cancellation in E[y^2] - E[y]^2.
    scale = gamma * jax.lax.rsqrt(var + _BN_EPS)
    shift = beta - mean * scale
    scale_row = jnp.tile(scale, G).reshape(1, GC).astype(jnp.float32)
    shift_row = jnp.tile(shift, G).reshape(1, GC).astype(jnp.float32)
    # TODO(synk): running_mean / running_var buffer updates are a training-time
    # side effect and do not affect the forward output; not materialized here.

    # ---- kernel 2: fused BN scale/shift + exact GELU, lane-dense stores ------
    out2d = pl.pallas_call(
        bn_gelu_kernel,
        grid=(n_tiles,),
        in_specs=[pl.BlockSpec((tile_rows, GC), lambda i: (i, 0)),
                  pl.BlockSpec((1, GC), lambda i: (0, 0)),
                  pl.BlockSpec((1, GC), lambda i: (0, 0))],
        out_specs=pl.BlockSpec((tile_rows, GC), lambda i: (i, 0)),
        out_shape=jax.ShapeDtypeStruct((R_pad, GC), x_nchw.dtype),
        compiler_params=cparams,
    )(y_conv, scale_row, shift_row)

    # Drop padded rows; packed (R, G*Cout) is the row-major flattening of NHWC.
    out_nhwc = out2d[:R].reshape(N, H, W, Cout)
    return jnp.transpose(out_nhwc, (0, 3, 1, 2))


def reference_forward(x_nchw, w_oihw, bias, gamma, beta):
    """Pure-JAX reference of the same Conv -> BN(train) -> GELU pipeline."""
    y = jax.lax.conv_general_dilated(
        x_nchw, w_oihw, window_strides=(1, 1), padding=((1, 1), (1, 1)),
        dimension_numbers=("NCHW", "OIHW", "NCHW"))
    y = y + bias[None, :, None, None]
    mean = jnp.mean(y, axis=(0, 2, 3), keepdims=True)
    var = jnp.mean(jnp.square(y - mean), axis=(0, 2, 3), keepdims=True)
    y = (y - mean) * jax.lax.rsqrt(var + _BN_EPS)
    y = y * gamma[None, :, None, None] + beta[None, :, None, None]
    return 0.5 * y * (1.0 + jax.lax.erf(y * _INV_SQRT2))


if __name__ == "__main__":
    key = jax.random.PRNGKey(0)
    kx, kw, kb = jax.random.split(key, 3)

    N, Cin, Cout, H, W = 2, 4, 8, 16, 16

    x = jax.random.normal(kx, (N, Cin, H, W), dtype=jnp.float32)
    # Deterministic parameter init (synthetic, PyTorch-like scales).
    fan_in = Cin * 3 * 3
    bound = 1.0 / (fan_in ** 0.5)
    w = jax.random.uniform(kw, (Cout, Cin, 3, 3), jnp.float32, -bound, bound)
    b = jax.random.uniform(kb, (Cout,), jnp.float32, -bound, bound)
    gamma = jnp.ones((Cout,), jnp.float32)   # BatchNorm2d default weight
    beta = jnp.zeros((Cout,), jnp.float32)   # BatchNorm2d default bias

    ref = jax.block_until_ready(reference_forward(x, w, b, gamma, beta))

    # f32 path: validates kernel logic tightly against the reference.
    out_f32 = jax.block_until_ready(
        conv_bn_relu_forward(x, w, b, gamma, beta, compute_dtype=jnp.float32))
    assert out_f32.shape == (N, Cout, H, W), out_f32.shape
    assert jnp.allclose(out_f32, ref, atol=1e-3, rtol=1e-3), (
        float(jnp.max(jnp.abs(out_f32 - ref))))

    # bf16 perf path (default): tolerance widened for bf16 MXU inputs and the
    # bf16 y_conv intermediate feeding the normalization (relative rounding
    # ~2^-8 amplified by 1/std after BN).
    out_bf16 = jax.block_until_ready(conv_bn_relu_forward(x, w, b, gamma, beta))
    assert out_bf16.shape == (N, Cout, H, W), out_bf16.shape
    assert jnp.allclose(out_bf16, ref, atol=5e-2, rtol=5e-2), (
        float(jnp.max(jnp.abs(out_bf16 - ref))))

    print("KERNEL_OK")
</pallas_src>

<mosaic_0001>
module attributes {stable_mosaic.version = 11 : i64} {
  func.func @conv_stats_kernel(%arg0: i32, %arg1: memref<32x576xf32, #tpu.memory_space<vmem>>, %arg2: memref<576x128xf32, #tpu.memory_space<vmem>>, %arg3: memref<32x128xf32, #tpu.memory_space<vmem>>, %arg4: memref<1x1x128xf32, #tpu.memory_space<vmem>>, %arg5: memref<1x1x128xf32, #tpu.memory_space<vmem>>) attributes {dimension_semantics = [#tpu.dimension_semantics<parallel>], iteration_bounds = array<i64: 1>, scalar_prefetch = 0 : i64, scratch_operands = 0 : i64, tpu.core_type = #tpu.core_type<tc>, window_params = [{transform_indices = @transform_0, window_bounds = array<i64: 32, 576>}, {pipeline_mode = #tpu.pipeline_mode<synchronous>, transform_indices = @transform_1, window_bounds = array<i64: 576, 128>}, {transform_indices = @transform_2, window_bounds = array<i64: 32, 128>}, {transform_indices = @transform_3, window_bounds = array<i64: 1, 1, 128>}, {transform_indices = @transform_4, window_bounds = array<i64: 1, 1, 128>}]} {
    %c0 = arith.constant 0 : index
    %c0_0 = arith.constant 0 : index
    %0 = vector.load %arg1[%c0, %c0_0] : memref<32x576xf32, #tpu.memory_space<vmem>>, vector<32x576xf32>
    %c0_1 = arith.constant 0 : index
    %c0_2 = arith.constant 0 : index
    %1 = vector.load %arg2[%c0_1, %c0_2] : memref<576x128xf32, #tpu.memory_space<vmem>>, vector<576x128xf32>
    %cst = arith.constant dense<0.000000e+00> : vector<32x128xf32>
    %2 = tpu.matmul %0, %1, %cst {dimension_numbers = #tpu.dot_dimension_numbers<[1], [0], [0], [1], [0, 0, 1, 1], [], []>} : vector<32x576xf32>, vector<576x128xf32>, vector<32x128xf32> -> vector<32x128xf32>
    %c0_3 = arith.constant 0 : index
    %c0_4 = arith.constant 0 : index
    %3 = vector.load %arg3[%c0_3, %c0_4] : memref<32x128xf32, #tpu.memory_space<vmem>>, vector<32x128xf32>
    tpu.vector_store %arg3[%c0_3, %c0_4], %2 {strides = array<i32>} : memref<32x128xf32, #tpu.memory_space<vmem>>, vector<32x128xf32>,
    %cst_5 = arith.constant dense<0.000000e+00> : vector<128xf32>
    %4 = vector.multi_reduction <add>, %2, %cst_5 [0] : vector<32x128xf32> to vector<128xf32>
    %5 = vector.shape_cast %4 : vector<128xf32> to vector<1x128xf32>
    %c0_6 = arith.constant 0 : index
    %c0_7 = arith.constant 0 : index
    %c0_8 = arith.constant 0 : index
    %6 = vector.load %arg4[%c0_6, %c0_7, %c0_8] : memref<1x1x128xf32, #tpu.memory_space<vmem>>, vector<1x1x128xf32>
    %7 = vector.shape_cast %6 : vector<1x1x128xf32> to vector<1x128xf32>
    %8 = vector.shape_cast %5 : vector<1x128xf32> to vector<1x1x128xf32>
    tpu.vector_store %arg4[%c0_6, %c0_7, %c0_8], %8 {strides = array<i32>} : memref<1x1x128xf32, #tpu.memory_space<vmem>>, vector<1x1x128xf32>,
    %9 = arith.mulf %2, %2 : vector<32x128xf32>
    %cst_9 = arith.constant dense<0.000000e+00> : vector<128xf32>
    %10 = vector.multi_reduction <add>, %9, %cst_9 [0] : vector<32x128xf32> to vector<128xf32>
    %11 = vector.shape_cast %10 : vector<128xf32> to vector<1x128xf32>
    %c0_10 = arith.constant 0 : index
    %c0_11 = arith.constant 0 : index
    %c0_12 = arith.constant 0 : index
    %12 = vector.load %arg5[%c0_10, %c0_11, %c0_12] : memref<1x1x128xf32, #tpu.memory_space<vmem>>, vector<1x1x128xf32>
    %13 = vector.shape_cast %12 : vector<1x1x128xf32> to vector<1x128xf32>
    %14 = vector.shape_cast %11 : vector<1x128xf32> to vector<1x1x128xf32>
    tpu.vector_store %arg5[%c0_10, %c0_11, %c0_12], %14 {strides = array<i32>} : memref<1x1x128xf32, #tpu.memory_space<vmem>>, vector<1x1x128xf32>,
    return
  }
  func.func @transform_0(%arg0: i32) -> (i32, i32) {
    %c0_i32 = arith.constant 0 : i32
    %c0_i32_0 = arith.constant 0 : i32
    return %arg0, %c0_i32 : i32, i32
  }
  func.func @transform_1(%arg0: i32) -> (i32, i32) {
    %c0_i32 = arith.constant 0 : i32
    %c0_i32_0 = arith.constant 0 : i32
    %c0_i32_1 = arith.constant 0 : i32
    return %c0_i32, %c0_i32_0 : i32, i32
  }
  func.func @transform_2(%arg0: i32) -> (i32, i32) {
    %c0_i32 = arith.constant 0 : i32
    %c0_i32_0 = arith.constant 0 : i32
    return %arg0, %c0_i32 : i32, i32
  }
  func.func @transform_3(%arg0: i32) -> (i32, i32, i32) {
    %c0_i32 = arith.constant 0 : i32
    %c0_i32_0 = arith.constant 0 : i32
    %c0_i32_1 = arith.constant 0 : i32
    return %arg0, %c0_i32, %c0_i32_0 : i32, i32, i32
  }
  func.func @transform_4(%arg0: i32) -> (i32, i32, i32) {
    %c0_i32 = arith.constant 0 : i32
    %c0_i32_0 = arith.constant 0 : i32
    %c0_i32_1 = arith.constant 0 : i32
    return %arg0, %c0_i32, %c0_i32_0 : i32, i32, i32
  }
}

</mosaic_0001>

<llo_original>
// kernel: tpu_custom_call.1
$region0: #{tpu_custom_call.1}
  #allocation0 [shape = 'u32[]', space=smem, size = 0x4, offset = 0x4, fixed_abs, tag = 'smem constant byte address 0x4 - core index']
  #allocation1 [shape = 'u32[144,128]{1,0:T(1,128)}', space=vmem, size = 0x12000, scoped, tag = 'internal scratch']
  %s0 = inlined_call_operand.hbm [shape: f32[32,576], index: 0, kind: input, shape index: {}]
  %s1 = inlined_call_operand.hbm [shape: f32[576,128], index: 1, kind: input, shape index: {}]
  %s2 = inlined_call_operand.hbm [shape: f32[32,128], index: 2, kind: output, shape index: {0}]
  %s3 = inlined_call_operand.hbm [shape: f32[1,1,128], index: 3, kind: output, shape index: {1}]
  %s4 = inlined_call_operand.hbm [shape: f32[1,1,128], index: 4, kind: output, shape index: {2}]
  %5 = xla_tuple %s2, %s3, %s4
  %s6 = sld [smem:[#allocation0]]
  $region42: #{tpu_custom_call.1} parent=0
    _
  %s8 = ssub.s32 1, %s6
  %s9 = scalar_select 0, %s8, %s6
  $region1: #{tpu_custom_call.1} parent=0
    #allocation2 [shape = 'u8[81920]{0}', space=vmem, size = 0x14000, scoped, tag = 'input window, operand 0, single buffered']
    #allocation3 [shape = 's32[1]{0}', space=sflag, size = 0x4, scoped, tag = 'scoped memory for tpu_custom_call.1']
    #allocation4 [shape = 's32[1]{0}', space=sflag, size = 0x4, scoped, tag = 'scoped memory for tpu_custom_call.1']
    #allocation5 [shape = 'u8[294912]{0}', space=vmem, size = 0x48000, scoped, tag = 'input window, operand 1, single buffered']
    #allocation6 [shape = 's32[1]{0}', space=sflag, size = 0x4, scoped, tag = 'scoped memory for tpu_custom_call.1']
    #allocation7 [shape = 'u8[16384]{0}', space=vmem, size = 0x4000, scoped, tag = 'output window, operand 0, single buffered']
    #allocation8 [shape = 'u8[512]{0}', space=vmem, size = 0x400, scoped, tag = 'output window, operand 1, single buffered']
    #allocation9 [shape = 's32[1]{0}', space=sflag, size = 0x4, scoped, tag = 'scoped memory for tpu_custom_call.1']
    #allocation10 [shape = 'u8[512]{0}', space=vmem, size = 0x400, scoped, tag = 'output window, operand 2, single buffered']
    %10 = vsyncpa [#allocation3], 0
    %11 = vsyncpa [#allocation6], 0
    %12 = vsyncpa [#allocation4], 0
    %13 = vsyncpa [#allocation9], 0
    // Predicated region
    $region2: #{tpu_custom_call.1} parent=1 // pred_check
      _
    $region3: #{tpu_custom_call.1} parent=1 // pred_check_branch
      %15 = sbr.rel (0) target = $region5
    $region4: #{tpu_custom_call.1} parent=1 // pred_region
      %s17 = ssub.s32 2560, 2560
      %18 = vsyncadd [#allocation3], %s17
      %s19 = sshll.u32 [#allocation2], 4
      %s20 = int_to_ptr.vmem [resolvable:$true] %s19
      %25 = dma.hbm_to_vmem [thread:$0]  %s0, 2560, %s20, [#allocation3], 640, 640, 40
    $region5: #{tpu_custom_call.1} parent=1 // pred_fallthru
      _
    // Predicated region
    $region6: #{tpu_custom_call.1} parent=1 // pred_check
      _
    $region7: #{tpu_custom_call.1} parent=1 // pred_check_branch
      %27 = sbr.rel (0) target = $region9
    $region8: #{tpu_custom_call.1} parent=1 // pred_region
      %s29 = ssub.s32 9216, 9216
      %30 = vsyncadd [#allocation6], %s29
      %s31 = sshll.u32 [#allocation5], 4
      %s32 = int_to_ptr.vmem [resolvable:$true] %s31
      %37 = dma.hbm_to_vmem [thread:$0]  %s1, 9216, %s32, [#allocation6], 128, 128, 8
    $region9: #{tpu_custom_call.1} parent=1 // pred_fallthru
      _
    // Predicated region
    $region10: #{tpu_custom_call.1} parent=1 // pred_check
      _
    $region11: #{tpu_custom_call.1} parent=1 // pred_check_branch
      %39 = sbr.rel (0) target = $region13
    $region12: #{tpu_custom_call.1} parent=1 // pred_region
      %40 = dma.done [#allocation3], 2560
    $region13: #{tpu_custom_call.1} parent=1 // pred_fallthru
      _
    // Predicated region
    $region14: #{tpu_custom_call.1} parent=1 // pred_check
      _
    $region15: #{tpu_custom_call.1} parent=1 // pred_check_branch
      %42 = sbr.rel (0) target = $region17
    $region16: #{tpu_custom_call.1} parent=1 // pred_region
      %43 = dma.done [#allocation6], 9216
    $region17: #{tpu_custom_call.1} parent=1 // pred_fallthru
      _
    %v44 = vld [vmem:[#allocation2] sm:$0xff]
    %v45 = vld [vmem:[#allocation2 + $0x8] sm:$0xff]
    %v46 = vld [vmem:[#allocation2 + $0x10] sm:$0xff]
    %v47 = vld [vmem:[#allocation2 + $0x18] sm:$0xff]
    %v48 = vld [vmem:[#allocation2 + $0x20] sm:$0xff]
    %v49 = vld [vmem:[#allocation2 + $0x28] sm:$0xff]
    %v50 = vld [vmem:[#allocation2 + $0x30] sm:$0xff]
    %v51 = vld [vmem:[#allocation2 + $0x38] sm:$0xff]
    %v52 = vld [vmem:[#allocation2 + $0x40] sm:$0xff]
    %v53 = vld [vmem:[#allocation2 + $0x48] sm:$0xff]
    %v54 = vld [vmem:[#allocation2 + $0x50] sm:$0xff]
    %v55 = vld [vmem:[#allocation2 + $0x58] sm:$0xff]
    %v56 = vld [vmem:[#allocation2 + $0x60] sm:$0xff]
    %v57 = vld [vmem:[#allocation2 + $0x68] sm:$0xff]
    %v58 = vld [vmem:[#allocation2 + $0x70] sm:$0xff]
    %v59 = vld [vmem:[#allocation2 + $0x78] sm:$0xff]
    %v60 = vld [vmem:[#allocation2 + $0x80] sm:$0xff]
    %v61 = vld [vmem:[#allocation2 + $0x88] sm:$0xff]
    %v62 = vld [vmem:[#allocation2 + $0x90] sm:$0xff]
    %v63 = vld [vmem:[#allocation2 + $0x98] sm:$0xff]
    %v64 = vld [vmem:[#allocation5] sm:$0xff]
    %v65 = vld [vmem:[#allocation5 + $0x8] sm:$0xff]
    %v66 = vld [vmem:[#allocation5 + $0x10] sm:$0xff]
    %v67 = vld [vmem:[#allocation5 + $0x18] sm:$0xff]
    %v68 = vld [vmem:[#allocation5 + $0x20] sm:$0xff]
    %v69 = vld [vmem:[#allocation5 + $0x28] sm:$0xff]
    %v70 = vld [vmem:[#allocation5 + $0x30] sm:$0xff]
    %v71 = vld [vmem:[#allocation5 + $0x38] sm:$0xff]
    %v72 = vld [vmem:[#allocation5 + $0x40] sm:$0xff]
    %v73 = vld [vmem:[#allocation5 + $0x48] sm:$0xff]
    %v74 = vld [vmem:[#allocation5 + $0x50] sm:$0xff]
    %v75 = vld [vmem:[#allocation5 + $0x58] sm:$0xff]
    %v76 = vld [vmem:[#allocation5 + $0x60] sm:$0xff]
    %v77 = vld [vmem:[#allocation5 + $0x68] sm:$0xff]
    %v78 = vld [vmem:[#allocation5 + $0x70] sm:$0xff]
    %v79 = vld [vmem:[#allocation5 + $0x78] sm:$0xff]
    %v80 = vld [vmem:[#allocation5 + $0x80] sm:$0xff]
    %v81 = vld [vmem:[#allocation5 + $0x88] sm:$0xff]
    %v82 = vld [vmem:[#allocation5 + $0x90] sm:$0xff]
    %v83 = vld [vmem:[#allocation5 + $0x98] sm:$0xff]
    %v84 = vld [vmem:[#allocation5 + $0xa0] sm:$0xff]
    %v85 = vld [vmem:[#allocation5 + $0xa8] sm:$0xff]
    %v86 = vld [vmem:[#allocation5 + $0xb0] sm:$0xff]
    %v87 = vld [vmem:[#allocation5 + $0xb8] sm:$0xff]
    %v88 = vld [vmem:[#allocation5 + $0xc0] sm:$0xff]
    %v89 = vld [vmem:[#allocation5 + $0xc8] sm:$0xff]
    %v90 = vld [vmem:[#allocation5 + $0xd0] sm:$0xff]
    %v91 = vld [vmem:[#allocation5 + $0xd8] sm:$0xff]
    %v92 = vld [vmem:[#allocation5 + $0xe0] sm:$0xff]
    %v93 = vld [vmem:[#allocation5 + $0xe8] sm:$0xff]
    %v94 = vld [vmem:[#allocation5 + $0xf0] sm:$0xff]
    %v95 = vld [vmem:[#allocation5 + $0xf8] sm:$0xff]
    %v96 = vld [vmem:[#allocation5 + $0x100] sm:$0xff]
    %v97 = vld [vmem:[#allocation5 + $0x108] sm:$0xff]
    %v98 = vld [vmem:[#allocation5 + $0x110] sm:$0xff]
    %v99 = vld [vmem:[#allocation5 + $0x118] sm:$0xff]
    %v100 = vld [vmem:[#allocation5 + $0x120] sm:$0xff]
    %v101 = vld [vmem:[#allocation5 + $0x128] sm:$0xff]
    %v102 = vld [vmem:[#allocation5 + $0x130] sm:$0xff]
    %v103 = vld [vmem:[#allocation5 + $0x138] sm:$0xff]
    %v104 = vld [vmem:[#allocation5 + $0x140] sm:$0xff]
    %v105 = vld [vmem:[#allocation5 + $0x148] sm:$0xff]
    %v106 = vld [vmem:[#allocation5 + $0x150] sm:$0xff]
    %v107 = vld [vmem:[#allocation5 + $0x158] sm:$0xff]
    %v108 = vld [vmem:[#allocation5 + $0x160] sm:$0xff]
    %v109 = vld [vmem:[#allocation5 + $0x168] sm:$0xff]
    %v110 = vld [vmem:[#allocation5 + $0x170] sm:$0xff]
    %v111 = vld [vmem:[#allocation5 + $0x178] sm:$0xff]
    %v112 = vld [vmem:[#allocation5 + $0x180] sm:$0xff]
    %v113 = vld [vmem:[#allocation5 + $0x188] sm:$0xff]
    %v114 = vld [vmem:[#allocation5 + $0x190] sm:$0xff]
    %v115 = vld [vmem:[#allocation5 + $0x198] sm:$0xff]
    %v116 = vld [vmem:[#allocation5 + $0x1a0] sm:$0xff]
    %v117 = vld [vmem:[#allocation5 + $0x1a8] sm:$0xff]
    %v118 = vld [vmem:[#allocation5 + $0x1b0] sm:$0xff]
    %v119 = vld [vmem:[#allocation5 + $0x1b8] sm:$0xff]
    %v120 = vld [vmem:[#allocation5 + $0x1c0] sm:$0xff]
    %v121 = vld [vmem:[#allocation5 + $0x1c8] sm:$0xff]
    %v122 = vld [vmem:[#allocation5 + $0x1d0] sm:$0xff]
    %v123 = vld [vmem:[#allocation5 + $0x1d8] sm:$0xff]
    %v124 = vld [vmem:[#allocation5 + $0x1e0] sm:$0xff]
    %v125 = vld [vmem:[#allocation5 + $0x1e8] sm:$0xff]
    %v126 = vld [vmem:[#allocation5 + $0x1f0] sm:$0xff]
    %v127 = vld [vmem:[#allocation5 + $0x1f8] sm:$0xff]
    %v128 = vld [vmem:[#allocation5 + $0x200] sm:$0xff]
    %v129 = vld [vmem:[#allocation5 + $0x208] sm:$0xff]
    %v130 = vld [vmem:[#allocation5 + $0x210] sm:$0xff]
    %v131 = vld [vmem:[#allocation5 + $0x218] sm:$0xff]
    %v132 = vld [vmem:[#allocation5 + $0x220] sm:$0xff]
    %v133 = vld [vmem:[#allocation5 + $0x228] sm:$0xff]
    %v134 = vld [vmem:[#allocation5 + $0x230] sm:$0xff]
    %v135 = vld [vmem:[#allocation5 + $0x238] sm:$0xff]
    %vm136 = vcmask 523264
    %v138 = vsel %vm136, %v48, 0
    %v141 = vsel %vm136, %v53, 0
    %v144 = vsel %vm136, %v58, 0
    %v147 = vsel %vm136, %v63, 0
    %149 = vmatprep.subr.mxu0 0.0
    %150 = vmatpush1.msra.mxu0 %v64
    %151 = vmatprep.subr.mxu0 0.0
    %152 = vmatpush1.msra.mxu0 %v65
    %153 = vmatprep.subr.mxu0 0.0
    %154 = vmatpush1.msra.mxu0 %v66
    %155 = vmatprep.subr.mxu0 0.0
    %156 = vmatpush1.msra.mxu0 %v67
    %157 = vmatprep.subr.mxu0 0.0
    %158 = vmatpush1.msra.mxu0 %v68
    %159 = vmatprep.subr.mxu0 0.0
    %160 = vmatpush1.msra.mxu0 %v69
    %161 = vmatprep.subr.mxu0 0.0
    %162 = vmatpush1.msra.mxu0 %v70
    %163 = vmatprep.subr.mxu0 0.0
    %164 = vmatpush1.msra.mxu0 %v71
    %165 = vmatprep.subr.mxu0 0.0
    %166 = vmatpush1.msra.mxu0 %v72
    %167 = vmatprep.subr.mxu0 0.0
    %168 = vmatpush1.msra.mxu0 %v73
    %169 = vmatprep.subr.mxu0 0.0
    %170 = vmatpush1.msra.mxu0 %v74
    %171 = vmatprep.subr.mxu0 0.0
    %172 = vmatpush1.msra.mxu0 %v75
    %173 = vmatprep.subr.mxu0 0.0
    %174 = vmatpush1.msra.mxu0 %v76
    %175 = vmatprep.subr.mxu0 0.0
    %176 = vmatpush1.msra.mxu0 %v77
    %177 = vmatprep.subr.mxu0 0.0
    %178 = vmatpush1.msra.mxu0 %v78
    %179 = vmatprep.subr.mxu0 0.0
    %180 = vmatpush1.msra.mxu0 %v79
    %181 = vmatprep.subr.mxu0 0.0
    %182 = vmatpush1.msra.mxu0 %v80
    %183 = vmatprep.subr.mxu0 0.0
    %184 = vmatpush1.msra.mxu0 %v81
    %185 = vmatprep.subr.mxu0 0.0
    %186 = vmatpush1.msra.mxu0 %v82
    %187 = vmatprep.subr.mxu0 0.0
    %188 = vmatpush1.msra.mxu0 %v83
    %189 = vmatprep.subr.mxu0 0.0
    %190 = vmatpush1.msra.mxu0 %v84
    %191 = vmatprep.subr.mxu0 0.0
    %192 = vmatpush1.msra.mxu0 %v85
    %193 = vmatprep.subr.mxu0 0.0
    %194 = vmatpush1.msra.mxu0 %v86
    %195 = vmatprep.subr.mxu0 0.0
    %196 = vmatpush1.msra.mxu0 %v87
    %197 = vmatprep.subr.mxu0 0.0
    %198 = vmatpush1.msra.mxu0 %v88
    %199 = vmatprep.subr.mxu0 0.0
    %200 = vmatpush1.msra.mxu0 %v89
    %201 = vmatprep.subr.mxu0 0.0
    %202 = vmatpush1.msra.mxu0 %v90
    %203 = vmatprep.subr.mxu0 0.0
    %204 = vmatpush1.msra.mxu0 %v91
    %205 = vmatprep.subr.mxu0 0.0
    %206 = vmatpush1.msra.mxu0 %v92
    %207 = vmatprep.subr.mxu0 0.0
    %208 = vmatpush1.msra.mxu0 %v93
    %209 = vmatprep.subr.mxu0 0.0
    %210 = vmatpush1.msra.mxu0 %v94
    %211 = vmatprep.subr.mxu0 0.0
    %212 = vmatpush1.msra.mxu0 %v95
    %213 = vmatprep.mubr.f32.mxu0 %v45
    %214 = vmatmul.mubr.f32.gmra.mrb[0].mxu0 %v44
    %v215 = vpop.f32.mrb[0].mxu0
    %v216 = vadd.f32 0.0, %v215
    %v217 = vpop.f32.mrb[0].mxu0
    %218 = vmatprep.mubr.f32.mxu0 %v50
    %219 = vmatmul.mubr.f32.gmra.mrb[0].mxu0 %v49
    %v220 = vpop.f32.mrb[0].mxu0
    %v221 = vadd.f32 0.0, %v220
    %v222 = vpop.f32.mrb[0].mxu0
    %223 = vmatprep.mubr.f32.mxu0 %v55
    %224 = vmatmul.mubr.f32.gmra.mrb[0].mxu0 %v54
    %v225 = vpop.f32.mrb[0].mxu0
    %v226 = vadd.f32 0.0, %v225
    %v227 = vpop.f32.mrb[0].mxu0
    %228 = vmatprep.mubr.f32.mxu0 %v60
    %229 = vmatmul.mubr.f32.gmra.mrb[0].mxu0 %v59
    %v230 = vpop.f32.mrb[0].mxu0
    %v231 = vadd.f32 0.0, %v230
    %v232 = vpop.f32.mrb[0].mxu0
    %233 = vdwg.mxu0
    %234 = vmatprep.subr.mxu0 0.0
    %235 = vmatpush1.msra.mxu0 %v96
    %236 = vmatprep.subr.mxu0 0.0
    %237 = vmatpush1.msra.mxu0 %v97
    %238 = vmatprep.subr.mxu0 0.0
    %239 = vmatpush1.msra.mxu0 %v98
    %240 = vmatprep.subr.mxu0 0.0
    %241 = vmatpush1.msra.mxu0 %v99
    %242 = vmatprep.subr.mxu0 0.0
    %243 = vmatpush1.msra.mxu0 %v100
    %244 = vmatprep.subr.mxu0 0.0
    %245 = vmatpush1.msra.mxu0 %v101
    %246 = vmatprep.subr.mxu0 0.0
    %247 = vmatpush1.msra.mxu0 %v102
    %248 = vmatprep.subr.mxu0 0.0
    %249 = vmatpush1.msra.mxu0 %v103
    %250 = vmatprep.subr.mxu0 0.0
    %251 = vmatpush1.msra.mxu0 %v104
    %252 = vmatprep.subr.mxu0 0.0
    %253 = vmatpush1.msra.mxu0 %v105
    %254 = vmatprep.subr.mxu0 0.0
    %255 = vmatpush1.msra.mxu0 %v106
    %256 = vmatprep.subr.mxu0 0.0
    %257 = vmatpush1.msra.mxu0 %v107
    %258 = vmatprep.subr.mxu0 0.0
    %259 = vmatpush1.msra.mxu0 %v108
    %260 = vmatprep.subr.mxu0 0.0
    %261 = vmatpush1.msra.mxu0 %v109
    %262 = vmatprep.subr.mxu0 0.0
    %263 = vmatpush1.msra.mxu0 %v110
    %264 = vmatprep.subr.mxu0 0.0
    %265 = vmatpush1.msra.mxu0 %v111
    %266 = vmatprep.subr.mxu0 0.0
    %267 = vmatpush1.msra.mxu0 %v112
    %268 = vmatprep.subr.mxu0 0.0
    %269 = vmatpush1.msra.mxu0 %v113
    %270 = vmatprep.subr.mxu0 0.0
    %271 = vmatpush1.msra.mxu0 %v114
    %272 = vmatprep.subr.mxu0 0.0
    %273 = vmatpush1.msra.mxu0 %v115
    %274 = vmatprep.subr.mxu0 0.0
    %275 = vmatpush1.msra.mxu0 %v116
    %276 = vmatprep.subr.mxu0 0.0
    %277 = vmatpush1.msra.mxu0 %v117
    %278 = vmatprep.subr.mxu0 0.0
    %279 = vmatpush1.msra.mxu0 %v118
    %280 = vmatprep.subr.mxu0 0.0
    %281 = vmatpush1.msra.mxu0 %v119
    %282 = vmatprep.subr.mxu0 0.0
    %283 = vmatpush1.msra.mxu0 %v120
    %284 = vmatprep.subr.mxu0 0.0
    %285 = vmatpush1.msra.mxu0 %v121
    %286 = vmatprep.subr.mxu0 0.0
    %287 = vmatpush1.msra.mxu0 %v122
    %288 = vmatprep.subr.mxu0 0.0
    %289 = vmatpush1.msra.mxu0 %v123
    %290 = vmatprep.subr.mxu0 0.0
    %291 = vmatpush1.msra.mxu0 %v124
    %292 = vmatprep.subr.mxu0 0.0
    %293 = vmatpush1.msra.mxu0 %v125
    %294 = vmatprep.subr.mxu0 0.0
    %295 = vmatpush1.msra.mxu0 %v126
    %296 = vmatprep.subr.mxu0 0.0
    %297 = vmatpush1.msra.mxu0 %v127
    %298 = vmatprep.mubr.f32.mxu0 %v47
    %299 = vmatmul.mubr.f32.gmra.mrb[0].mxu0 %v46
    %v300 = vpop.f32.mrb[0].mxu0
    %v301 = vadd.f32 %v216, %v300
    %v302 = vpop.f32.mrb[0].mxu0
    %303 = vmatprep.mubr.f32.mxu0 %v52
    %304 = vmatmul.mubr.f32.gmra.mrb[0].mxu0 %v51
    %v305 = vpop.f32.mrb[0].mxu0
    %v306 = vadd.f32 %v221, %v305
    %v307 = vpop.f32.mrb[0].mxu0
    %308 = vmatprep.mubr.f32.mxu0 %v57
    %309 = vmatmul.mubr.f32.gmra.mrb[0].mxu0 %v56
    %v310 = vpop.f32.mrb[0].mxu0
    %v311 = vadd.f32 %v226, %v310
    %v312 = vpop.f32.mrb[0].mxu0
    %313 = vmatprep.mubr.f32.mxu0 %v62
    %314 = vmatmul.mubr.f32.gmra.mrb[0].mxu0 %v61
    %v315 = vpop.f32.mrb[0].mxu0
    %v316 = vadd.f32 %v231, %v315
    %v317 = vpop.f32.mrb[0].mxu0
    %318 = vdwg.mxu0
    %319 = vmatprep.subr.mxu0 0.0
    %320 = vmatpush1.msra.mxu0 %v128
    %321 = vmatprep.subr.mxu0 0.0
    %322 = vmatpush1.msra.mxu0 %v129
    %323 = vmatprep.subr.mxu0 0.0
    %324 = vmatpush1.msra.mxu0 %v130
    %325 = vmatprep.subr.mxu0 0.0
    %326 = vmatpush1.msra.mxu0 %v131
    %327 = vmatprep.subr.mxu0 0.0
    %328 = vmatpush1.msra.mxu0 %v132
    %329 = vmatprep.subr.mxu0 0.0
    %330 = vmatpush1.msra.mxu0 %v133
    %331 = vmatprep.subr.mxu0 0.0
    %332 = vmatpush1.msra.mxu0 %v134
    %333 = vmatprep.subr.mxu0 0.0
    %334 = vmatpush1.msra.mxu0 %v135
    %335 = vmatprep.subr.mxu0 0.0
    %336 = vmatpush1.msra.mxu0 0.0
    %337 = vmatprep.subr.mxu0 0.0
    %338 = vmatpush1.msra.mxu0 0.0
    %339 = vmatprep.subr.mxu0 0.0
    %340 = vmatpush1.msra.mxu0 0.0
    %341 = vmatprep.subr.mxu0 0.0
    %342 = vmatpush1.msra.mxu0 0.0
    %343 = vmatprep.subr.mxu0 0.0
    %344 = vmatpush1.msra.mxu0 0.0
    %345 = vmatprep.subr.mxu0 0.0
    %346 = vmatpush1.msra.mxu0 0.0
    %347 = vmatprep.subr.mxu0 0.0
    %348 = vmatpush1.msra.mxu0 0.0
    %349 = vmatprep.subr.mxu0 0.0
    %350 = vmatpush1.msra.mxu0 0.0
    %351 = vmatprep.subr.mxu0 0.0
    %352 = vmatpush1.msra.mxu0 0.0
    %353 = vmatprep.subr.mxu0 0.0
    %354 = vmatpush1.msra.mxu0 0.0
    %355 = vmatprep.subr.mxu0 0.0
    %356 = vmatpush1.msra.mxu0 0.0
    %357 = vmatprep.subr.mxu0 0.0
    %358 = vmatpush1.msra.mxu0 0.0
    %359 = vmatprep.subr.mxu0 0.0
    %360 = vmatpush1.msra.mxu0 0.0
    %361 = vmatprep.subr.mxu0 0.0
    %362 = vmatpush1.msra.mxu0 0.0
    %363 = vmatprep.subr.mxu0 0.0
    %364 = vmatpush1.msra.mxu0 0.0
    %365 = vmatprep.subr.mxu0 0.0
    %366 = vmatpush1.msra.mxu0 0.0
    %367 = vmatprep.subr.mxu0 0.0
    %368 = vmatpush1.msra.mxu0 0.0
    %369 = vmatprep.subr.mxu0 0.0
    %370 = vmatpush1.msra.mxu0 0.0
    %371 = vmatprep.subr.mxu0 0.0
    %372 = vmatpush1.msra.mxu0 0.0
    %373 = vmatprep.subr.mxu0 0.0
    %374 = vmatpush1.msra.mxu0 0.0
    %375 = vmatprep.subr.mxu0 0.0
    %376 = vmatpush1.msra.mxu0 0.0
    %377 = vmatprep.subr.mxu0 0.0
    %378 = vmatpush1.msra.mxu0 0.0
    %379 = vmatprep.subr.mxu0 0.0
    %380 = vmatpush1.msra.mxu0 0.0
    %381 = vmatprep.subr.mxu0 0.0
    %382 = vmatpush1.msra.mxu0 0.0
    %383 = vmatprep.mubr.f32.mxu0 0.0
    %384 = vmatmul.mubr.f32.gmra.mrb[0].mxu0 %v138
    %v385 = vpop.f32.mrb[0].mxu0
    %v386 = vadd.f32 %v301, %v385
    %v387 = vpop.f32.mrb[0].mxu0
    %388 = vmatprep.mubr.f32.mxu0 0.0
    %389 = vmatmul.mubr.f32.gmra.mrb[0].mxu0 %v141
    %v390 = vpop.f32.mrb[0].mxu0
    %v391 = vadd.f32 %v306, %v390
    %v392 = vpop.f32.mrb[0].mxu0
    %393 = vmatprep.mubr.f32.mxu0 0.0
    %394 = vmatmul.mubr.f32.gmra.mrb[0].mxu0 %v144
    %v395 = vpop.f32.mrb[0].mxu0
    %v396 = vadd.f32 %v311, %v395
    %v397 = vpop.f32.mrb[0].mxu0
    %398 = vmatprep.mubr.f32.mxu0 0.0
    %399 = vmatmul.mubr.f32.gmra.mrb[0].mxu0 %v147
    %v400 = vpop.f32.mrb[0].mxu0
    %v401 = vadd.f32 %v316, %v400
    %v402 = vpop.f32.mrb[0].mxu0
    %403 = vdwg.mxu0
    %404 = vst [vmem:[#allocation7] sm:$0xff] %v386
    %405 = vst [vmem:[#allocation7 + $0x8] sm:$0xff] %v391
    %406 = vst [vmem:[#allocation7 + $0x10] sm:$0xff] %v396
    %407 = vst [vmem:[#allocation7 + $0x18] sm:$0xff] %v401
    %v408 = vadd.f32 %v386, %v391
    %v409 = vadd.f32 %v408, %v396
    %v410 = vadd.f32 %v409, %v401
    %v411 = vrot.slane %v410, 4
    %v412 = vadd.f32 %v410, %v411
    %v413 = vrot.slane %v412, 2
    %v414 = vadd.f32 %v412, %v413
    %v415 = vrot.slane %v414, 1
    %v416 = vadd.f32 %v414, %v415
    %417 = vst [vmem:[#allocation8] sm:$0x1] %v416
    %v418 = vmul.f32 %v386, %v386
    %v419 = vmul.f32 %v391, %v391
    %v420 = vmul.f32 %v396, %v396
    %v421 = vmul.f32 %v401, %v401
    %v422 = vadd.f32 %v418, %v419
    %v423 = vadd.f32 %v422, %v420
    %v424 = vadd.f32 %v423, %v421
    %v425 = vrot.slane %v424, 4
    %v426 = vadd.f32 %v424, %v425
    %v427 = vrot.slane %v426, 2
    %v428 = vadd.f32 %v426, %v427
    %v429 = vrot.slane %v428, 1
    %v430 = vadd.f32 %v428, %v429
    %431 = vst [vmem:[#allocation10] sm:$0x1] %v430
    // Predicated region
    $region18: #{tpu_custom_call.1} parent=1 // pred_check
      _
    $region19: #{tpu_custom_call.1} parent=1 // pred_check_branch
      %433 = sbr.rel (0) target = $region21
    $region20: #{tpu_custom_call.1} parent=1 // pred_region
      %s435 = ssub.s32 512, 512
      %436 = vsyncadd [#allocation4], %s435
      %s437 = sshll.u32 [#allocation7], 4
      %s438 = int_to_ptr.vmem [resolvable:$true] %s437
      %443 = dma.vmem_to_hbm [thread:$0]  %s438, 512, %s2, [#allocation4], 128, 128, 8
    $region21: #{tpu_custom_call.1} parent=1 // pred_fallthru
      _
    // Predicated region
    $region22: #{tpu_custom_call.1} parent=1 // pred_check
      _
    $region23: #{tpu_custom_call.1} parent=1 // pred_check_branch
      %445 = sbr.rel (0) target = $region25
    $region24: #{tpu_custom_call.1} parent=1 // pred_region
      %s447 = ssub.s32 16, 16
      %448 = vsyncadd [#allocation9], %s447
      %s450 = sshll.u32 [#allocation8], 4
      %s451 = int_to_ptr.vmem [resolvable:$true] %s450
      %453 = dma.vmem_to_hbm [thread:$0]  %s451, 16, %s3, [#allocation9]
    $region25: #{tpu_custom_call.1} parent=1 // pred_fallthru
      _
    // Predicated region
    $region26: #{tpu_custom_call.1} parent=1 // pred_check
      _
    $region27: #{tpu_custom_call.1} parent=1 // pred_check_branch
      %455 = sbr.rel (0) target = $region29
    $region28: #{tpu_custom_call.1} parent=1 // pred_region
      %s457 = ssub.s32 16, 16
      %458 = vsyncadd [#allocation9], %s457
      %s460 = sshll.u32 [#allocation10], 4
      %s461 = int_to_ptr.vmem [resolvable:$true] %s460
      %463 = dma.vmem_to_hbm [thread:$0]  %s461, 16, %s4, [#allocation9]
    $region29: #{tpu_custom_call.1} parent=1 // pred_fallthru
      _
    // Predicated region
    $region30: #{tpu_custom_call.1} parent=1 // pred_check
      _
    $region31: #{tpu_custom_call.1} parent=1 // pred_check_branch
      %465 = sbr.rel (0) target = $region33
    $region32: #{tpu_custom_call.1} parent=1 // pred_region
      %466 = dma.done [#allocation4], 512
    $region33: #{tpu_custom_call.1} parent=1 // pred_fallthru
      _
    // Predicated region
    $region34: #{tpu_custom_call.1} parent=1 // pred_check
      _
    $region35: #{tpu_custom_call.1} parent=1 // pred_check_branch
      %468 = sbr.rel (0) target = $region37
    $region36: #{tpu_custom_call.1} parent=1 // pred_region
      %469 = dma.done [#allocation9], 16
    $region37: #{tpu_custom_call.1} parent=1 // pred_fallthru
      _
    // Predicated region
    $region38: #{tpu_custom_call.1} parent=1 // pred_check
      _
    $region39: #{tpu_custom_call.1} parent=1 // pred_check_branch
      %471 = sbr.rel (0) target = $region41
    $region40: #{tpu_custom_call.1} parent=1 // pred_region
      %472 = dma.done [#allocation9], 16
    $region41: #{tpu_custom_call.1} parent=1 // pred_fallthru
      _
    %473 = vsyncpa [#allocation3], 1
    %474 = vsyncpa [#allocation6], 1
    %475 = vsyncpa [#allocation4], 1
    %476 = vsyncpa [#allocation9], 1

</llo_original>
